<compile_context>
chip_gen: v6e
topology: v6e:2x2x1
jax: 0.10.0
libtpu: 0.0.40
codegen_flags: <defaults>
</compile_context>

<pallas_src>
import jax
import jax.numpy as jnp
from jax.experimental import pallas as pl
from jax.experimental.pallas import tpu as pltpu


def _prompt_add_kernel(x_ref, patch_ref, o_ref):
    # x_ref, o_ref: (B, C, Hb, W); patch_ref: (1, C, P, P).
    # Bulk pass-through copy (dominant, unmasked where W is tile-aligned).
    o_ref[...] = x_ref[...]
    # Overwrite the top-left PxP corner with x + patch (broadcast over batch).
    p = patch_ref.shape[-1]
    o_ref[:, :, :p, :p] = (x_ref[:, :, :p, :p] + patch_ref[...]).astype(o_ref.dtype)


def _choose_batch_block(n, c, h, w, itemsize, max_block_bytes=3 << 20):
    """Images per grid step: cap VMEM block bytes, keep the pipeline deep."""
    # VMEM tiles the minor-two block dims up to (8, 128); account for padding.
    padded_h = -(-h // 8) * 8
    padded_w = -(-w // 128) * 128
    per_image = c * padded_h * padded_w * itemsize
    cap = max(1, max_block_bytes // per_image)
    if n >= 4:
        cap = min(cap, n // 4)   # >=2 grid steps per v7x TensorCore
    elif n >= 2:
        cap = min(cap, n // 2)   # at least one step per core
    cap = max(1, min(cap, n))
    for b in range(cap, 0, -1):  # largest divisor of n (no ragged tail)
        if n % b == 0:
            return b
    return 1


def fixed_patch_prompter(x, patch):
    """x: (N, C, H, W); patch: (1, C, P, P) -> x + corner patch (pure, no aliasing)."""
    N, C, H, W = x.shape
    P = patch.shape[-1]
    assert patch.shape == (1, C, P, P)
    assert P <= H and P <= W

    patch = patch.astype(x.dtype)
    itemsize = jnp.dtype(x.dtype).itemsize
    B = _choose_batch_block(N, C, H, W, itemsize)

    cost = pl.CostEstimate(
        flops=N * C * P * P,
        transcendentals=0,
        bytes_accessed=2 * N * C * H * W * itemsize + C * P * P * itemsize,
    )

    return pl.pallas_call(
        _prompt_add_kernel,
        out_shape=jax.ShapeDtypeStruct((N, C, H, W), x.dtype),
        grid=(N // B,),
        in_specs=[
            # B images per grid step, native layout, full (H, W) per block.
            pl.BlockSpec((B, C, H, W), lambda n: (n, 0, 0, 0)),
            # Tiny patch, same block every step -> fetched once, stays resident.
            pl.BlockSpec((1, C, P, P), lambda n: (0, 0, 0, 0)),
        ],
        out_specs=pl.BlockSpec((B, C, H, W), lambda n: (n, 0, 0, 0)),
        compiler_params=pltpu.CompilerParams(dimension_semantics=("parallel",)),
        cost_estimate=cost,
    )(x, patch)


def fixed_patch_prompter_donated(x, patch):
    """Aliased variant: output reuses x's buffer; only the top rows containing
    the patch are DMA'd and rewritten (~P/H of the HBM traffic when donated)."""
    N, C, H, W = x.shape
    P = patch.shape[-1]
    assert patch.shape == (1, C, P, P)
    assert P <= H and P <= W

    patch = patch.astype(x.dtype)
    itemsize = jnp.dtype(x.dtype).itemsize

    # Corner slab rows, rounded to a sublane-tile multiple (or the full H).
    R = min(H, -(-P // 8) * 8)
    B = _choose_batch_block(N, C, R, W, itemsize)

    cost = pl.CostEstimate(
        flops=N * C * P * P,
        transcendentals=0,
        bytes_accessed=2 * N * C * R * W * itemsize + C * P * P * itemsize,
    )

    return pl.pallas_call(
        _prompt_add_kernel,
        out_shape=jax.ShapeDtypeStruct((N, C, H, W), x.dtype),
        grid=(N // B,),
        in_specs=[
            # Only the top R rows of each image are read.
            pl.BlockSpec((B, C, R, W), lambda n: (n, 0, 0, 0)),
            pl.BlockSpec((1, C, P, P), lambda n: (0, 0, 0, 0)),
        ],
        # Only the top R rows are written back; rows [R, H) keep x's values
        # because the output buffer aliases x.
        out_specs=pl.BlockSpec((B, C, R, W), lambda n: (n, 0, 0, 0)),
        input_output_aliases={0: 0},
        compiler_params=pltpu.CompilerParams(dimension_semantics=("parallel",)),
        cost_estimate=cost,
    )(x, patch)


def reference(x, patch):
    P = patch.shape[-1]
    prompt = jnp.zeros((1,) + x.shape[1:], dtype=x.dtype)
    prompt = prompt.at[:, :, :P, :P].set(patch.astype(x.dtype))
    return x + prompt


if __name__ == "__main__":
    # Shapes implied by the module: 3-channel images, square patch.
    N, C, H, W = 2, 3, 16, 16
    prompt_size = 6

    key = jax.random.PRNGKey(0)
    kx, kp = jax.random.split(key)
    x = jax.random.normal(kx, (N, C, H, W), dtype=jnp.float32)
    # Deterministic stand-in for nn.Parameter(torch.randn(1, 3, P, P)).
    patch = jax.random.normal(kp, (1, C, prompt_size, prompt_size),
                              dtype=jnp.float32)

    ref = reference(x, patch)

    out = jax.block_until_ready(fixed_patch_prompter(x, patch))
    assert out.shape == (N, C, H, W)
    assert jnp.allclose(out, ref, atol=1e-6), "streaming kernel mismatch vs reference"

    out2 = jax.block_until_ready(fixed_patch_prompter_donated(x, patch))
    assert out2.shape == (N, C, H, W)
    assert jnp.allclose(out2, ref, atol=1e-6), "aliased kernel mismatch vs reference"

    print("KERNEL_OK")
</pallas_src>

<mosaic_0001>
module attributes {stable_mosaic.version = 11 : i64} {
  func.func @_prompt_add_kernel(%arg0: i32, %arg1: memref<1x3x16x16xf32, #tpu.memory_space<vmem>>, %arg2: memref<1x3x6x6xf32, #tpu.memory_space<vmem>>, %arg3: memref<1x3x16x16xf32, #tpu.memory_space<vmem>>) attributes {dimension_semantics = [#tpu.dimension_semantics<parallel>], iteration_bounds = array<i64: 2>, scalar_prefetch = 0 : i64, scratch_operands = 0 : i64, tpu.core_type = #tpu.core_type<tc>, window_params = [{transform_indices = @transform_0, window_bounds = array<i64: 1, 3, 16, 16>}, {pipeline_mode = #tpu.pipeline_mode<synchronous>, transform_indices = @transform_1, window_bounds = array<i64: 1, 3, 6, 6>}, {transform_indices = @transform_2, window_bounds = array<i64: 1, 3, 16, 16>}]} {
    %c0 = arith.constant 0 : index
    %c0_0 = arith.constant 0 : index
    %c0_1 = arith.constant 0 : index
    %c0_2 = arith.constant 0 : index
    %0 = vector.load %arg1[%c0, %c0_0, %c0_1, %c0_2] : memref<1x3x16x16xf32, #tpu.memory_space<vmem>>, vector<1x3x16x16xf32>
    %c0_3 = arith.constant 0 : index
    %c0_4 = arith.constant 0 : index
    %c0_5 = arith.constant 0 : index
    %c0_6 = arith.constant 0 : index
    %1 = vector.load %arg3[%c0_3, %c0_4, %c0_5, %c0_6] : memref<1x3x16x16xf32, #tpu.memory_space<vmem>>, vector<1x3x16x16xf32>
    tpu.vector_store %arg3[%c0_3, %c0_4, %c0_5, %c0_6], %0 {strides = array<i32>} : memref<1x3x16x16xf32, #tpu.memory_space<vmem>>, vector<1x3x16x16xf32>,
    %c0_7 = arith.constant 0 : index
    %c0_8 = arith.constant 0 : index
    %c0_9 = arith.constant 0 : index
    %c0_10 = arith.constant 0 : index
    %2 = vector.load %arg1[%c0_7, %c0_8, %c0_9, %c0_10] : memref<1x3x16x16xf32, #tpu.memory_space<vmem>>, vector<1x3x6x6xf32>
    %c0_11 = arith.constant 0 : index
    %c0_12 = arith.constant 0 : index
    %c0_13 = arith.constant 0 : index
    %c0_14 = arith.constant 0 : index
    %3 = vector.load %arg2[%c0_11, %c0_12, %c0_13, %c0_14] : memref<1x3x6x6xf32, #tpu.memory_space<vmem>>, vector<1x3x6x6xf32>
    %4 = arith.addf %2, %3 : vector<1x3x6x6xf32>
    %c0_15 = arith.constant 0 : index
    %c0_16 = arith.constant 0 : index
    %c0_17 = arith.constant 0 : index
    %c0_18 = arith.constant 0 : index
    %5 = vector.load %arg3[%c0_15, %c0_16, %c0_17, %c0_18] : memref<1x3x16x16xf32, #tpu.memory_space<vmem>>, vector<1x3x6x6xf32>
    tpu.vector_store %arg3[%c0_15, %c0_16, %c0_17, %c0_18], %4 {strides = array<i32>} : memref<1x3x16x16xf32, #tpu.memory_space<vmem>>, vector<1x3x6x6xf32>,
    return
  }
  func.func @transform_0(%arg0: i32) -> (i32, i32, i32, i32) {
    %c0_i32 = arith.constant 0 : i32
    %c0_i32_0 = arith.constant 0 : i32
    %c0_i32_1 = arith.constant 0 : i32
    %c0_i32_2 = arith.constant 0 : i32
    return %arg0, %c0_i32, %c0_i32_0, %c0_i32_1 : i32, i32, i32, i32
  }
  func.func @transform_1(%arg0: i32) -> (i32, i32, i32, i32) {
    %c0_i32 = arith.constant 0 : i32
    %c0_i32_0 = arith.constant 0 : i32
    %c0_i32_1 = arith.constant 0 : i32
    %c0_i32_2 = arith.constant 0 : i32
    %c0_i32_3 = arith.constant 0 : i32
    return %c0_i32, %c0_i32_0, %c0_i32_1, %c0_i32_2 : i32, i32, i32, i32
  }
  func.func @transform_2(%arg0: i32) -> (i32, i32, i32, i32) {
    %c0_i32 = arith.constant 0 : i32
    %c0_i32_0 = arith.constant 0 : i32
    %c0_i32_1 = arith.constant 0 : i32
    %c0_i32_2 = arith.constant 0 : i32
    return %arg0, %c0_i32, %c0_i32_0, %c0_i32_1 : i32, i32, i32, i32
  }
}

</mosaic_0001>

<llo_original>
// kernel: tpu_custom_call.1
$region0: #{tpu_custom_call.1}
  #allocation0 [shape = 'u32[]', space=smem, size = 0x4, offset = 0x4, fixed_abs, tag = 'smem constant byte address 0x4 - core index']
  #allocation1 [shape = 'u32[144,128]{1,0:T(1,128)}', space=vmem, size = 0x12000, scoped, tag = 'internal scratch']
  %s0 = inlined_call_operand.hbm [shape: f32[2,3,16,16], index: 0, kind: input, shape index: {}]
  %s1 = inlined_call_operand.vmem [shape: f32[1,3,6,6], index: 1, kind: input, shape index: {}]
  %s2 = inlined_call_operand.hbm [shape: f32[2,3,16,16], index: 2, kind: output, shape index: {}]
  %s3 = sld [smem:[#allocation0]]
  $region45: #{tpu_custom_call.1} parent=0
    _
  %s5 = ssub.s32 1, %s3
  %s6 = scalar_select 0, %s5, %s3
  $region1: #{tpu_custom_call.1} parent=0
    #allocation2 [shape = 'u8[49152]{0}', space=vmem, size = 0xc000, scoped, tag = 'input window, operand 0']
    #allocation3 [shape = 's32[2]{0}', space=sflag, size = 0x8, scoped, tag = 'scoped memory for tpu_custom_call.1']
    #allocation4 [shape = 's32[2]{0}', space=sflag, size = 0x8, scoped, tag = 'scoped memory for tpu_custom_call.1']
    #allocation5 [shape = 'u8[49152]{0}', space=vmem, size = 0xc000, scoped, tag = 'output window, operand 0']
    %7 = vsyncpa [#allocation3], 0
    %s8 = scalar_lea.sflag [#allocation3], 1
    %9 = vsyncpa %s8, 0
    %10 = vsyncpa [#allocation4], 0
    %s11 = scalar_lea.sflag [#allocation4], 1
    %12 = vsyncpa %s11, 0
    loop: start=0, step=1, limit=4
    $region2: #{tpu_custom_call.1} parent=1 // loop_pre_header
      _
    $region3: #{tpu_custom_call.1} parent=1 // loop_header
      %s14 = sphi 0, %s18
      %p15 = scmp.ge.s32.totalorder %s14, 4
      %s24 = sphi 0, %s26
      %s27 = sphi 0, %s24
      %s28 = sphi 0, %s27
      %s44 = sphi 0, %s28
      %s48 = sphi 0, %s48
      %s50 = sphi 0, %s48
      %s51 = sphi 0, %s50
      %s65 = sphi 0, %s51
      %s71 = sphi 0, %s73
      %s74 = sphi 0, %s71
      %s75 = sphi 0, %s74
      %s91 = sphi 0, %s75
    $region4: #{tpu_custom_call.1} parent=1 // loop_header_branch
      %17 = sbr.rel (%p15) target = $region8
    $region5: #{tpu_custom_call.1} parent=1 // loop_body
      %s19 = ssub.s32 %s14, 1
      %s20 = ssub.s32 %s14, 2
      %s21 = sadd.s32 %s14, 1
      %s22 = ssub.s32 %s14, %s21
      %p23 = scmp.eq.s32.totalorder %s22, 0
      %s25 = sadd.s32 %s24, 1
      %s26 = scalar_select %p23, %s24, %s25
      %p29 = pneg %p23
      %p30 = scmp.eq.s32.totalorder %s14, 1
      %p31 = por %p29, %p30
      %p32 = scmp.ne.s32.totalorder %s24, %s27
      %p33 = scmp.eq.s32.totalorder %s14, 0
      %p34 = por %p32, %p33
      %p35 = scmp.ne.s32.totalorder %s24, %s27
      %p36 = scmp.eq.s32.totalorder %s19, 1
      %p37 = por %p35, %p36
      %p38 = scmp.ne.s32.totalorder %s27, %s28
      %p39 = scmp.eq.s32.totalorder %s19, 0
      %p40 = por %p38, %p39
      %p41 = scmp.ne.s32.totalorder %s27, %s28
      %p42 = scmp.eq.s32.totalorder %s20, 1
      %p43 = por %p41, %p42
      %p45 = scmp.ne.s32.totalorder %s28, %s44
      %p46 = scmp.eq.s32.totalorder %s20, 0
      %p47 = por %p45, %p46
      %s49 = sadd.s32 %s48, 1
      %p52 = scmp.eq.s32.totalorder %s14, 1
      %p53 = scmp.ne.s32.totalorder %s48, %s50
      %p54 = scmp.eq.s32.totalorder %s14, 0
      %p55 = por %p53, %p54
      %p56 = scmp.ne.s32.totalorder %s48, %s50
      %p57 = scmp.eq.s32.totalorder %s19, 1
      %p58 = por %p56, %p57
      %p59 = scmp.ne.s32.totalorder %s50, %s51
      %p60 = scmp.eq.s32.totalorder %s19, 0
      %p61 = por %p59, %p60
      %p62 = scmp.ne.s32.totalorder %s50, %s51
      %p63 = scmp.eq.s32.totalorder %s20, 1
      %p64 = por %p62, %p63
      %p66 = scmp.ne.s32.totalorder %s51, %s65
      %p67 = scmp.eq.s32.totalorder %s20, 0
      %p68 = por %p66, %p67
      %s69 = ssub.s32 %s14, %s21
      %p70 = scmp.eq.s32.totalorder %s69, 0
      %s72 = sadd.s32 %s71, 1
      %s73 = scalar_select %p70, %s71, %s72
      %p76 = pneg %p70
      %p77 = scmp.eq.s32.totalorder %s14, 1
      %p78 = por %p76, %p77
      %p79 = scmp.ne.s32.totalorder %s71, %s74
      %p80 = scmp.eq.s32.totalorder %s14, 0
      %p81 = por %p79, %p80
      %p82 = scmp.ne.s32.totalorder %s71, %s74
      %p83 = scmp.eq.s32.totalorder %s19, 1
      %p84 = por %p82, %p83
      %p85 = scmp.ne.s32.totalorder %s74, %s75
      %p86 = scmp.eq.s32.totalorder %s19, 0
      %p87 = por %p85, %p86
      %p88 = scmp.ne.s32.totalorder %s74, %s75
      %p89 = scmp.eq.s32.totalorder %s20, 1
      %p90 = por %p88, %p89
      %p92 = scmp.ne.s32.totalorder %s75, %s91
      %p93 = scmp.eq.s32.totalorder %s20, 0
      %p94 = por %p92, %p93
      %p95 = scmp.le.s32.totalorder 1, %s14
      %p96 = scmp.lt.s32.totalorder %s14, 3
      %p97 = pnand %p95, %p96
      %p98 = pneg %p97
      // Predicated region
      $region9: #{tpu_custom_call.1} parent=5 // pred_check
        _
      $region10: #{tpu_custom_call.1} parent=5 // pred_check_branch
        %100 = sbr.rel (%p97) target = $region12
      $region11: #{tpu_custom_call.1} parent=5 // pred_region
        %s101 = ssub.s32 %s14, 1
        // Predicated region
        $region13: #{tpu_custom_call.1} parent=11 // pred_check
          %p102 = pneg %p61
        $region14: #{tpu_custom_call.1} parent=11 // pred_check_branch
          %104 = sbr.rel (%p102) target = $region16
        $region15: #{tpu_custom_call.1} parent=11 // pred_region
          _
        $region16: #{tpu_custom_call.1} parent=11 // pred_fallthru
          _
      $region12: #{tpu_custom_call.1} parent=5 // pred_fallthru
        _
      %p105 = scmp.lt.s32.totalorder %s14, 2
      // Predicated region
      $region17: #{tpu_custom_call.1} parent=5 // pred_check
        %p106 = pneg %p105
      $region18: #{tpu_custom_call.1} parent=5 // pred_check_branch
        %108 = sbr.rel (%p106) target = $region20
      $region19: #{tpu_custom_call.1} parent=5 // pred_region
        // Predicated region
        $region21: #{tpu_custom_call.1} parent=19 // pred_check
          %p109 = pneg %p34
        $region22: #{tpu_custom_call.1} parent=19 // pred_check_branch
          %111 = sbr.rel (%p109) target = $region24
        $region23: #{tpu_custom_call.1} parent=19 // pred_region
          %s112 = sand.u32 %s24, 1
          %s113 = scalar_lea.sflag [#allocation3], %s112
          %s114 = sand.u32 %s24, 1
          %s115 = smul.addr %s114, 48
          %s116 = scalar_lea.vmem [#allocation2], %s115
          %s118 = ssub.s32 768, 768
          %119 = vsyncadd %s113, %s118
          %s120 = smul.addr %s14, 6
          %s121 = smul.addr %s120, 128
          %s122 = scalar_lea.hbm %s0, %s121
          %s123 = sshll.u32 %s116, 4
          %s124 = int_to_ptr.vmem [resolvable:$true] %s123
          %129 = dma.hbm_to_vmem [thread:$0]  %s122, 768, %s124, %s113, 128, 128, 8
        $region24: #{tpu_custom_call.1} parent=19 // pred_fallthru
          _
      $region20: #{tpu_custom_call.1} parent=5 // pred_fallthru
        _
      %p130 = scmp.le.s32.totalorder 1, %s14
      %p131 = scmp.lt.s32.totalorder %s14, 3
      %p132 = pnand %p130, %p131
      %p133 = pneg %p132
      // Predicated region
      $region25: #{tpu_custom_call.1} parent=5 // pred_check
        _
      $region26: #{tpu_custom_call.1} parent=5 // pred_check_branch
        %135 = sbr.rel (%p132) target = $region28
      $region27: #{tpu_custom_call.1} parent=5 // pred_region
        %s136 = ssub.s32 %s14, 1
        %s137 = sand.u32 %s27, 1
        %s138 = scalar_lea.sflag [#allocation3], %s137
        %s139 = sand.u32 %s27, 1
        %s140 = smul.addr %s139, 48
        %s141 = scalar_lea.vmem [#allocation2], %s140
        // Predicated region
        $region29: #{tpu_custom_call.1} parent=27 // pred_check
          %p142 = pneg %p40
        $region30: #{tpu_custom_call.1} parent=27 // pred_check_branch
          %144 = sbr.rel (%p142) target = $region32
        $region31: #{tpu_custom_call.1} parent=27 // pred_region
          %145 = dma.done %s138, 768
        $region32: #{tpu_custom_call.1} parent=27 // pred_fallthru
          _
        %s146 = sand.u32 %s27, 1
        %s147 = scalar_lea.sflag [#allocation3], %s146
        %s148 = sand.u32 %s27, 1
        %s149 = smul.addr %s148, 48
        %s150 = scalar_lea.vmem [#allocation2], %s149
        %p151 = pneg %p40
        %p152 = pneg %p37
        %p153 = pneg %p61
        %p154 = pneg %p58
        %p155 = pneg %p87
        %p156 = pneg %p84
        %s157 = sand.u32 %s74, 1
        %s158 = scalar_lea.sflag [#allocation4], %s157
        %s159 = sand.u32 %s74, 1
        %s160 = smul.addr %s159, 48
        %s161 = scalar_lea.vmem [#allocation5], %s160
        %v162 = vld [vmem:[%s141] sm:$0xff]
        %v163 = vld [vmem:[%s141 + $0x8] sm:$0xff]
        %v164 = vld [vmem:[%s141 + $0x10] sm:$0xff]
        %v165 = vld [vmem:[%s141 + $0x18] sm:$0xff]
        %v166 = vld [vmem:[%s141 + $0x20] sm:$0xff]
        %v167 = vld [vmem:[%s141 + $0x28] sm:$0xff]
        %vm168 = vcmask 130048
        %169 = vst.msk [vmem:[%s161] sm:$0xff] %vm168, %v162
        %170 = vst.msk [vmem:[%s161 + $0x8] sm:$0xff] %vm168, %v163
        %171 = vst.msk [vmem:[%s161 + $0x10] sm:$0xff] %vm168, %v164
        %172 = vst.msk [vmem:[%s161 + $0x18] sm:$0xff] %vm168, %v165
        %173 = vst.msk [vmem:[%s161 + $0x20] sm:$0xff] %vm168, %v166
        %174 = vst.msk [vmem:[%s161 + $0x28] sm:$0xff] %vm168, %v167
        %v175 = vld [vmem:[%s141] sm:$0x3f]
        %v176 = vld [vmem:[%s141 + $0x10] sm:$0x3f]
        %v177 = vld [vmem:[%s141 + $0x20] sm:$0x3f]
        %v178 = vld [vmem:[%s1] sm:$0x3f]
        %v179 = vld [vmem:[%s1 + $0x8] sm:$0x3f]
        %v180 = vld [vmem:[%s1 + $0x10] sm:$0x3f]
        %v181 = vadd.f32 %v175, %v178
        %v182 = vadd.f32 %v176, %v179
        %v183 = vadd.f32 %v177, %v180
        %vm184 = vcmask 46080
        %185 = vst.msk [vmem:[%s161] sm:$0x3f] %vm184, %v181
        %186 = vst.msk [vmem:[%s161 + $0x10] sm:$0x3f] %vm184, %v182
        %187 = vst.msk [vmem:[%s161 + $0x20] sm:$0x3f] %vm184, %v183
        %s188 = sand.u32 %s74, 1
        %s189 = scalar_lea.sflag [#allocation4], %s188
        %s190 = sand.u32 %s74, 1
        %s191 = smul.addr %s190, 48
        %s192 = scalar_lea.vmem [#allocation5], %s191
        // Predicated region
        $region33: #{tpu_custom_call.1} parent=27 // pred_check
          %p193 = pneg %p84
        $region34: #{tpu_custom_call.1} parent=27 // pred_check_branch
          %195 = sbr.rel (%p193) target = $region36
        $region35: #{tpu_custom_call.1} parent=27 // pred_region
          %s197 = ssub.s32 768, 768
          %198 = vsyncadd %s189, %s197
          %s199 = smul.addr %s19, 6
          %s200 = smul.addr %s199, 128
          %s201 = scalar_lea.hbm %s2, %s200
          %s202 = sshll.u32 %s192, 4
          %s203 = int_to_ptr.vmem [resolvable:$true] %s202
          %208 = dma.vmem_to_hbm [thread:$0]  %s203, 768, %s201, %s189, 128, 128, 8
        $region36: #{tpu_custom_call.1} parent=27 // pred_fallthru
          _
      $region28: #{tpu_custom_call.1} parent=5 // pred_fallthru
        _
      %p209 = scmp.le.s32.totalorder 2, %s14
      // Predicated region
      $region37: #{tpu_custom_call.1} parent=5 // pred_check
        %p210 = pneg %p209
      $region38: #{tpu_custom_call.1} parent=5 // pred_check_branch
        %212 = sbr.rel (%p210) target = $region40
      $region39: #{tpu_custom_call.1} parent=5 // pred_region
        %s213 = ssub.s32 %s14, 2
        // Predicated region
        $region41: #{tpu_custom_call.1} parent=39 // pred_check
          %p214 = pneg %p90
        $region42: #{tpu_custom_call.1} parent=39 // pred_check_branch
          %216 = sbr.rel (%p214) target = $region44
        $region43: #{tpu_custom_call.1} parent=39 // pred_region
          %s217 = sand.u32 %s75, 1
          %s218 = scalar_lea.sflag [#allocation4], %s217
          %s219 = sand.u32 %s75, 1
          %s220 = smul.addr %s219, 48
          %s221 = scalar_lea.vmem [#allocation5], %s220
          %222 = dma.done %s218, 768
        $region44: #{tpu_custom_call.1} parent=39 // pred_fallthru
          _
      $region40: #{tpu_custom_call.1} parent=5 // pred_fallthru
        _
    $region6: #{tpu_custom_call.1} parent=1 // loop_footer
      %s18 = sadd.s32 1, %s14
    $region7: #{tpu_custom_call.1} parent=1 // loop_footer_branch
      %13 = sbr.rel target = $region3
    $region8: #{tpu_custom_call.1} parent=1 // loop_exit
      _
    %223 = vsyncpa [#allocation3], 1
    %s224 = scalar_lea.sflag [#allocation3], 1
    %225 = vsyncpa %s224, 1
    %226 = vsyncpa [#allocation4], 1
    %s227 = scalar_lea.sflag [#allocation4], 1
    %228 = vsyncpa %s227, 1

</llo_original>
